<compile_context>
chip_gen: v5e
topology: v5e:2x2
jax: 0.10.0
libtpu: 0.0.40
codegen_flags: <defaults>
</compile_context>

<pallas_src>
import numpy as np
import jax
import jax.numpy as jnp
from jax.experimental import pallas as pl
from jax.experimental.pallas import tpu as pltpu


# ----------------------------------------------------------------------------
# Shape logic: exact replica of the PyTorch module's forward() bookkeeping.
# ----------------------------------------------------------------------------
def _flatten_new_shape(shape, start_dim: int, end_dim: int):
    ndim = len(shape)
    start_dim = start_dim % ndim
    end_dim = end_dim % ndim
    multiplier = int(
        np.prod(
            [x if (start_dim <= i <= end_dim) else 1 for i, x in enumerate(shape)],
            dtype=int,
        )
    )
    new_shape = [1 if (start_dim <= i <= end_dim) else x for i, x in enumerate(shape)]
    new_shape[end_dim if end_dim < ndim - 1 else start_dim] *= multiplier
    # NOTE: the reference module drops ALL remaining size-1 dims (quirk kept).
    new_shape = [x for x in new_shape if x > 1]
    return tuple(new_shape)


# ----------------------------------------------------------------------------
# HBM -> HBM DMA copy kernel (no VMEM, no TensorCore work).
# ----------------------------------------------------------------------------
_LANE = 128
_MAX_CHUNKS = 8                       # max DMAs in flight (one sem slot each)
_TARGET_CHUNK_BYTES = 8 * 1024 * 1024 # per-chunk DMA granularity target


def _cdiv(a: int, b: int) -> int:
    return -(-a // b)


def _make_hbm_copy_kernel(chunks):
    """Build a kernel that copies `x_hbm` into `o_hbm` purely with DMAs.

    chunks: tuple of (row_offset, row_count) static ints to copy along the
            leading axis, or None to copy the whole ref in a single DMA.
    """

    def kernel(x_hbm, o_hbm, sem):
        copies = []
        if chunks is None:
            cp = pltpu.make_async_copy(x_hbm, o_hbm, sem.at[0])
            cp.start()
            copies.append(cp)
        else:
            for i, (off, cnt) in enumerate(chunks):
                cp = pltpu.make_async_copy(
                    x_hbm.at[pl.ds(off, cnt)],
                    o_hbm.at[pl.ds(off, cnt)],
                    sem.at[i],
                )
                cp.start()              # all chunks in flight at once
                copies.append(cp)
        for cp in copies:               # then drain
            cp.wait()

    return kernel


def _materializing_copy(x_flat: jax.Array, total: int) -> jax.Array:
    """Materializing copy of a flat array via HBM->HBM DMA; returned flat."""
    itemsize = jnp.dtype(x_flat.dtype).itemsize

    if total % _LANE == 0:
        # Lane-dense slab (rows, cols) purely for tidy DMA descriptors.
        cols = _LANE
        for c in (2048, 1024, 512, 256):
            if total % c == 0:
                cols = c
                break
        rows = total // cols
        row_bytes = cols * itemsize
        target_rows = max(1, _TARGET_CHUNK_BYTES // row_bytes)
        n_chunks = max(1, min(_MAX_CHUNKS, _cdiv(rows, target_rows)))
        chunk_rows = _cdiv(rows, n_chunks)
        chunk_rows = _cdiv(chunk_rows, 8) * 8   # keep chunk starts HBM-tile aligned
        chunks = []
        off = 0
        while off < rows:
            cnt = min(chunk_rows, rows - off)
            chunks.append((off, cnt))
            off += cnt
        chunks = tuple(chunks)
        slab_shape = (rows, cols)
        n_sems = len(chunks)
        kernel = _make_hbm_copy_kernel(chunks)
    else:
        # No multiple-of-128 factorization: still materialize (review fix),
        # using a single whole-ref DMA on a (1, total) slab.
        slab_shape = (1, total)
        n_sems = 1
        kernel = _make_hbm_copy_kernel(None)

    x2 = x_flat.reshape(slab_shape)     # layout-only glue
    out2 = pl.pallas_call(
        kernel,
        out_shape=jax.ShapeDtypeStruct(slab_shape, x_flat.dtype),
        in_specs=[pl.BlockSpec(memory_space=pl.ANY)],   # stay in HBM
        out_specs=pl.BlockSpec(memory_space=pl.ANY),    # stay in HBM
        scratch_shapes=[pltpu.SemaphoreType.DMA((n_sems,))],
        cost_estimate=pl.CostEstimate(
            flops=0, transcendentals=0, bytes_accessed=2 * total * itemsize
        ),
    )(x2)
    return out2.reshape(total)


# ----------------------------------------------------------------------------
# Public wrapper: matches torch Flatten(start_dim, end_dim).forward semantics.
# ----------------------------------------------------------------------------
def flatten_pallas(
    x: jax.Array,
    start_dim: int = 1,
    end_dim: int = -1,
    materialize: bool = False,
) -> jax.Array:
    """Flatten dims [start_dim, end_dim] inclusive (PyTorch module semantics).

    materialize=False (default, production path): metadata-only jnp.reshape,
    zero HBM traffic. materialize=True: fresh buffer via HBM->HBM DMA kernel.
    """
    new_shape = _flatten_new_shape(x.shape, start_dim, end_dim)
    total = int(np.prod(x.shape, dtype=int)) if x.ndim > 0 else 1

    if (not materialize) or total == 0:
        return jnp.reshape(x, new_shape)

    x_flat = jnp.reshape(x, (total,))           # layout-only glue
    out_flat = _materializing_copy(x_flat, total)
    return jnp.reshape(out_flat, new_shape)     # layout-only glue


if __name__ == "__main__":
    key = jax.random.PRNGKey(0)
    # Small NCHW input consistent with a conv-net feature map.
    B, C, H, W = 2, 4, 16, 16
    x = jax.random.normal(key, (B, C, H, W), dtype=jnp.float32)

    # Reference: plain row-major flatten semantics of the PyTorch module.
    y_ref = jnp.reshape(x, (B, C * H * W))

    # Materializing Pallas path (HBM->HBM DMA copy kernel).
    y = flatten_pallas(x, start_dim=1, end_dim=-1, materialize=True)
    y = jax.block_until_ready(y)
    assert y.shape == (B, C * H * W), y.shape
    assert y.dtype == x.dtype
    np.testing.assert_array_equal(np.asarray(y), np.asarray(y_ref))

    # Same path with a packed dtype (DMA is a bitwise copy, dtype-agnostic).
    xb = x.astype(jnp.bfloat16)
    yb = jax.block_until_ready(flatten_pallas(xb, 1, -1, materialize=True))
    np.testing.assert_array_equal(
        np.asarray(yb), np.asarray(jnp.reshape(xb, (B, C * H * W)))
    )

    # Odd shape with no multiple-of-128 factorization: still materializes via a
    # single whole-ref DMA (fixes the previous silent non-materialize branch).
    xo = jax.random.normal(jax.random.PRNGKey(1), (3, 5, 7), dtype=jnp.float32)
    yo = jax.block_until_ready(flatten_pallas(xo, 0, -1, materialize=True))
    np.testing.assert_array_equal(
        np.asarray(yo), np.asarray(jnp.reshape(xo, (3 * 5 * 7,)))
    )

    # Metadata-only production path (zero HBM traffic).
    y_fast = jax.block_until_ready(flatten_pallas(x, 1, -1, materialize=False))
    np.testing.assert_array_equal(np.asarray(y_fast), np.asarray(y_ref))

    print("KERNEL_OK")
</pallas_src>

<mosaic_0001>
module attributes {stable_mosaic.version = 11 : i64} {
  func.func @kernel(%arg0: memref<1x2048xf32, #tpu.memory_space<any>>, %arg1: memref<1x2048xf32, #tpu.memory_space<any>>, %arg2: memref<1x!tpu.dma_semaphore, #tpu.memory_space<semaphore_mem>>) attributes {dimension_semantics = [], scalar_prefetch = 0 : i64, scratch_operands = 1 : i64, tpu.core_type = #tpu.core_type<tc>} {
    %c0_i32 = arith.constant 0 : i32
    %c0_i32_0 = arith.constant 0 : i32
    %c0_i32_1 = arith.constant 0 : i32
    %0 = tpu.memref_slice %arg0[%c0_i32_0, %c0_i32_1] : memref<1x2048xf32, #tpu.memory_space<any>> -> memref<1x2048xf32, #tpu.memory_space<any>>
    %c0_i32_2 = arith.constant 0 : i32
    %c0_i32_3 = arith.constant 0 : i32
    %1 = tpu.memref_slice %arg1[%c0_i32_2, %c0_i32_3] : memref<1x2048xf32, #tpu.memory_space<any>> -> memref<1x2048xf32, #tpu.memory_space<any>>
    %2 = tpu.memref_slice %arg2[%c0_i32] : memref<1x!tpu.dma_semaphore, #tpu.memory_space<semaphore_mem>> -> memref<1x!tpu.dma_semaphore, #tpu.memory_space<semaphore_mem>>
    %3 = tpu.memref_squeeze %2 : memref<1x!tpu.dma_semaphore, #tpu.memory_space<semaphore_mem>> -> memref<!tpu.dma_semaphore, #tpu.memory_space<semaphore_mem>>
    tpu.enqueue_dma source(%0 : memref<1x2048xf32, #tpu.memory_space<any>>) target(%1 : memref<1x2048xf32, #tpu.memory_space<any>>) target_semaphore(%3 : memref<!tpu.dma_semaphore, #tpu.memory_space<semaphore_mem>>)
    %c0_i32_4 = arith.constant 0 : i32
    %c0_i32_5 = arith.constant 0 : i32
    %c0_i32_6 = arith.constant 0 : i32
    %4 = tpu.memref_slice %arg0[%c0_i32_5, %c0_i32_6] : memref<1x2048xf32, #tpu.memory_space<any>> -> memref<1x2048xf32, #tpu.memory_space<any>>
    %c0_i32_7 = arith.constant 0 : i32
    %c0_i32_8 = arith.constant 0 : i32
    %5 = tpu.memref_slice %arg1[%c0_i32_7, %c0_i32_8] : memref<1x2048xf32, #tpu.memory_space<any>> -> memref<1x2048xf32, #tpu.memory_space<any>>
    %6 = tpu.memref_slice %arg2[%c0_i32_4] : memref<1x!tpu.dma_semaphore, #tpu.memory_space<semaphore_mem>> -> memref<1x!tpu.dma_semaphore, #tpu.memory_space<semaphore_mem>>
    %7 = tpu.memref_squeeze %6 : memref<1x!tpu.dma_semaphore, #tpu.memory_space<semaphore_mem>> -> memref<!tpu.dma_semaphore, #tpu.memory_space<semaphore_mem>>
    tpu.wait_dma2 semaphore(%7 : memref<!tpu.dma_semaphore, #tpu.memory_space<semaphore_mem>>) src(%4 : memref<1x2048xf32, #tpu.memory_space<any>>) dst(%5 : memref<1x2048xf32, #tpu.memory_space<any>>)
    return
  }
}

</mosaic_0001>

<llo_original>
// kernel: tpu_custom_call.1
$region0: #{tpu_custom_call.1}
  #allocation0 [shape = 'u32[]', space=smem, size = 0x4, offset = 0x4, fixed_abs, tag = 'smem constant byte address 0x4 - core index']
  #allocation1 [shape = 'u32[72,128]{1,0:T(1,128)}', space=vmem, size = 0x9000, scoped, tag = 'internal scratch']
  #allocation2 [shape = 's32[1]{0}', space=sflag, size = 0x4, scoped, tag = 'scratch operand']
  #allocation3 [shape = 's32[]', space=sflag, size = 0x4, offset = 0, fixed_abs, tag = 'sflag constant byte address 0x0 - dummy sync flag']
  #allocation4 [shape = 'u32[0]{0}', space=smem, size = 0, offset = 0, fixed_abs, tag = 'smem constant byte address 0x0 - null']
  %s0 = inlined_call_operand.hbm [shape: f32[1,2048], index: 0, kind: input, shape index: {}]
  %s1 = inlined_call_operand.hbm [shape: f32[1,2048], index: 1, kind: output, shape index: {}]
  %s2 = sld [smem:[#allocation0]]
  $region2: #{tpu_custom_call.1} parent=0
    _
  %s4 = ssub.s32 1, %s2
  %s5 = scalar_select 0, %s4, %s2
  %s7 = sshll.u32 1, 14
  %s8 = sxor.u32 4294967295, %s7
  %s10 = sshll.u32 %s0, 4
  %s11 = int_to_ptr.hbm [resolvable:$true] %s10
  %s12 = sshll.u32 %s1, 4
  %s13 = int_to_ptr.hbm [resolvable:$true] %s12
  %16 = dma.general %s11, 256, %s13, [#allocation2], [#allocation3], [#allocation4], 0, 0
  %s17 = smul.u32 1, 16
  %s18 = sshll.u32 %s17, 4
  %19 = dma.done [#allocation2], %s18
  %20 = vsyncmov [#allocation2]
  %s21 = vpop.sfrf %20
  %p22 = scmp.eq.s32.totalorder %s21, 0
  %p23 = pneg %p22
  %25 = shalt.err (%p23)

</llo_original>
